<compile_context>
chip_gen: v6e
topology: v6e:2x2x1
jax: 0.10.0
libtpu: 0.0.40
codegen_flags: <defaults>
</compile_context>

<pallas_src>
import functools

import jax
import jax.numpy as jnp
from jax import lax
from jax.experimental import pallas as pl
from jax.experimental.pallas import tpu as pltpu

N_OPS = 6       # [none, skip_connect, max_pool_3, avg_pool_3, conv_1, conv_3]
LN_EPS = 1e-12  # BertLayerNorm epsilon

# MXU operand dtype. f32 keeps strict parity with the f32 reference; set to
# jnp.bfloat16 for 2-4x MXU throughput / half the weight VMEM when acceptable.
_MXU_DTYPE = jnp.float32


# ---------------------------------------------------------------------------
# Fused SearchCell kernel (one grid step == one batch element).
# ---------------------------------------------------------------------------
def _search_cell_kernel(amax_ref, s0_ref, s1_ref, wp0_ref, wp1cat_ref,
                        gamma_ref, beta_ref, *w_and_out, nodes, C):
    # amax_ref   : SMEM (n_edges,) f32          -- max_pool_3 alphas (only VPU op left)
    # s0_ref     : (1, C_pp, L)   s1_ref : (1, C_p, L)   -- channels-first, L on lanes
    # wp0_ref    : (C, C_pp)      wp1cat_ref : (4C, C_p) -- [preproc1 ; concat_conv1]
    # gamma/beta : (nodes*C, 1)
    # w_and_out  : nodes folded per-node weights (C, n_in*3C), then the output ref
    # o_ref      : (1, nodes*C, L)
    w_node_refs = w_and_out[:nodes]
    o_ref = w_and_out[nodes]

    s0 = s0_ref[0]                                     # (C_pp, L)
    s1 = s1_ref[0]                                     # (C_p, L)
    L = s0.shape[1]
    neg = jnp.finfo(jnp.float32).min

    # Pointwise preproc convs == channel matmuls on the MXU. preproc1/concat_conv1
    # share the same LHS -> one fused (4C, C_p) @ (C_p, L) matmul.
    x0 = jnp.dot(wp0_ref[...].astype(_MXU_DTYPE), s0.astype(_MXU_DTYPE),
                 preferred_element_type=jnp.float32)                     # (C, L)
    r = jnp.dot(wp1cat_ref[...].astype(_MXU_DTYPE), s1.astype(_MXU_DTYPE),
                preferred_element_type=jnp.float32)                      # (4C, L)
    x1 = r[:C]                                                           # (C, L)
    s1_out = r[C:]                                                       # (3C, L)

    # Border masks for the 3-wide stencils: built once per grid step (L-only, lanes).
    pos = lax.broadcasted_iota(jnp.int32, (1, L), 1)
    not_first = pos > 0
    not_last = pos < L - 1

    def make_state_cache(x):
        # Sequence shifts via XLU lane rotation + one-column border masks; computed
        # once per *state* and reused by every edge that consumes it.
        xp_raw = pltpu.roll(x, shift=1, axis=1)        # xp_raw[:, l] = x[:, l-1]
        xn_raw = pltpu.roll(x, shift=L - 1, axis=1)    # xn_raw[:, l] = x[:, l+1]
        x_prev = jnp.where(not_first, xp_raw, 0.0)     # zero pad (conv / avg)
        x_next = jnp.where(not_last, xn_raw, 0.0)
        # max_pool_3 (stride 1, pad 1; -inf padding like torch MaxPool1d).
        x_max = jnp.maximum(jnp.maximum(jnp.where(not_first, xp_raw, neg), x),
                            jnp.where(not_last, xn_raw, neg))
        x_cat = jnp.concatenate([x_prev, x, x_next], axis=0)             # (3C, L)
        return x_cat, x_max

    caches = [make_state_cache(x0), make_state_cache(x1)]
    node_outs = []
    e = 0
    for i in range(nodes):
        n_in = 2 + i
        # One MXU matmul per node (K = n_in*3C): skip_connect, avg_pool_3, conv_1 and
        # conv_3 of every incoming edge -- and the sum over edges -- all live in the
        # pre-folded weight. Only max_pool_3 remains as VPU work.
        x_big = jnp.concatenate([caches[j][0] for j in range(n_in)], axis=0)
        s_cur = jnp.dot(w_node_refs[i][...].astype(_MXU_DTYPE),
                        x_big.astype(_MXU_DTYPE),
                        preferred_element_type=jnp.float32)              # (C, L)
        for j in range(n_in):
            s_cur = s_cur + amax_ref[e] * caches[j][1]
            e += 1
        node_outs.append(s_cur)
        if i < nodes - 1:               # the last node's output never feeds an edge
            caches.append(make_state_cache(s_cur))

    # Channel concat + residual + BertLayerNorm over channels (sublane axis).
    z = jnp.concatenate(node_outs, axis=0) + s1_out                      # (nodes*C, L)
    mu = jnp.mean(z, axis=0, keepdims=True)
    zc = z - mu
    var = jnp.mean(zc * zc, axis=0, keepdims=True)
    inv = lax.rsqrt(var + LN_EPS)
    o_ref[0] = (zc * inv * gamma_ref[...] + beta_ref[...]).astype(o_ref.dtype)


# ---------------------------------------------------------------------------
# Wrapper: fold alphas / identities into per-node stacked weights ONCE in XLA,
# then launch the fused cell kernel (no layout transposes at the boundary).
# ---------------------------------------------------------------------------
def _fold_node_weights(params, alphas, nodes, C):
    """For each edge: skip_connect and avg_pool_3 become scaled identities on the
    3 tap blocks, conv_1/conv_3 are alpha-scaled; all incoming edges of a node are
    concatenated along K so the node is a single (C, n_in*3C) matmul."""
    eye = jnp.eye(C, dtype=jnp.float32)
    w_nodes = []
    e = 0
    for i in range(nodes):
        edge_blocks = []
        for _ in range(2 + i):
            a = alphas[e]                           # [none, skip, max, avg, c1, c3]
            w1 = params["edges"][e]["w1"]           # (C, C)    used as x @ w1
            w3 = params["edges"][e]["w3"]           # (3, C, C) taps l-1, l, l+1
            third = a[3] / 3.0
            b_prev = a[5] * w3[0].T + third * eye
            b_cent = a[4] * w1.T + a[5] * w3[1].T + (a[1] + third) * eye
            b_next = a[5] * w3[2].T + third * eye
            edge_blocks.append(jnp.concatenate([b_prev, b_cent, b_next], axis=1))
            e += 1
        w_nodes.append(jnp.concatenate(edge_blocks, axis=1))   # (C, (2+i)*3C)
    return w_nodes


def search_cell_forward(params, s0, s1, w_dag, nodes):
    """s0: (N, C_pp, L), s1: (N, C_p, L) -- native PyTorch Conv1d layout, kept
    end-to-end (channels on sublanes, L on lanes; no wrapper transposes)."""
    N, C_pp, L = s0.shape
    _, C_p, _ = s1.shape
    C = params["preproc0"].shape[1]
    C_out = params["concat_conv1"].shape[1]
    # The residual (cat(states[2:]) + s1_out) requires nodes*C == 3*C.
    assert nodes * C == C_out, (
        f"concat of {nodes} nodes * C={C} must match concat_conv1 out={C_out}")

    alphas = jnp.concatenate(w_dag, axis=0).astype(jnp.float32)      # (n_edges, N_OPS)
    a_max = alphas[:, 2]                                             # flat 1-D -> SMEM

    wp0 = params["preproc0"].T.astype(jnp.float32)                   # (C, C_pp)
    wp1cat = jnp.concatenate(                                        # (4C, C_p)
        [params["preproc1"].T, params["concat_conv1"].T], axis=0).astype(jnp.float32)
    w_nodes = _fold_node_weights(params, alphas, nodes, C)
    gamma = params["ln_gamma"].reshape(C_out, 1)
    beta = params["ln_beta"].reshape(C_out, 1)

    kernel = functools.partial(_search_cell_kernel, nodes=nodes, C=C)
    in_specs = [
        pl.BlockSpec(memory_space=pltpu.MemorySpace.SMEM),           # a_max (n_edges,)
        pl.BlockSpec((1, C_pp, L), lambda n: (n, 0, 0)),             # s0
        pl.BlockSpec((1, C_p, L), lambda n: (n, 0, 0)),              # s1
        pl.BlockSpec((C, C_pp), lambda n: (0, 0)),                   # preproc0 (cf)
        pl.BlockSpec((4 * C, C_p), lambda n: (0, 0)),                # preproc1+concat_conv1
        pl.BlockSpec((C_out, 1), lambda n: (0, 0)),                  # ln gamma
        pl.BlockSpec((C_out, 1), lambda n: (0, 0)),                  # ln beta
    ] + [
        pl.BlockSpec((C, (2 + i) * 3 * C), lambda n: (0, 0))         # folded node weights
        for i in range(nodes)
    ]

    return pl.pallas_call(
        kernel,
        out_shape=jax.ShapeDtypeStruct((N, C_out, L), jnp.float32),
        grid=(N,),
        in_specs=in_specs,
        out_specs=pl.BlockSpec((1, C_out, L), lambda n: (n, 0, 0)),
        compiler_params=pltpu.CompilerParams(
            dimension_semantics=("parallel",),    # >=2 parallel units for v7x's 2 TCs
            vmem_limit_bytes=32 * 1024 * 1024,
        ),
    )(a_max, s0.astype(jnp.float32), s1.astype(jnp.float32),
      wp0, wp1cat, gamma, beta, *w_nodes)


# ---------------------------------------------------------------------------
# Pure-JAX reference (ground truth for the numeric check).
# ---------------------------------------------------------------------------
def search_cell_reference(params, s0, s1, w_dag, nodes):
    s0_t = jnp.transpose(s0, (0, 2, 1))
    s1_t = jnp.transpose(s1, (0, 2, 1))
    x0 = s0_t @ params["preproc0"]
    x1 = s1_t @ params["preproc1"]
    s1_out = s1_t @ params["concat_conv1"]
    _, L, _ = x0.shape
    idx = jnp.arange(L).reshape(1, L, 1)
    neg = jnp.finfo(jnp.float32).min
    alphas = jnp.concatenate(w_dag, axis=0)

    def shift_prev(x):
        return jnp.concatenate([jnp.zeros_like(x[:, :1]), x[:, :-1]], axis=1)

    def shift_next(x):
        return jnp.concatenate([x[:, 1:], jnp.zeros_like(x[:, :1])], axis=1)

    states = [x0, x1]
    e = 0
    for _ in range(nodes):
        s_cur = None
        for j in range(len(states)):
            x = states[j]
            a = alphas[e]
            xp = shift_prev(x)
            xn = shift_next(x)
            xm_p = jnp.where(idx > 0, xp, neg)
            xm_n = jnp.where(idx < L - 1, xn, neg)
            w1 = params["edges"][e]["w1"]
            w3 = params["edges"][e]["w3"]
            y = (a[1] * x
                 + a[2] * jnp.maximum(jnp.maximum(xm_p, x), xm_n)
                 + a[3] * (xp + x + xn) / 3.0
                 + a[4] * (x @ w1)
                 + a[5] * (xp @ w3[0] + x @ w3[1] + xn @ w3[2]))
            s_cur = y if s_cur is None else s_cur + y
            e += 1
        states.append(s_cur)

    z = jnp.concatenate(states[2:], axis=-1) + s1_out
    mu = z.mean(-1, keepdims=True)
    var = ((z - mu) ** 2).mean(-1, keepdims=True)
    out = (z - mu) / jnp.sqrt(var + LN_EPS) * params["ln_gamma"] + params["ln_beta"]
    return jnp.transpose(out, (0, 2, 1))


# ---------------------------------------------------------------------------
# Parameter init (deterministic, xavier-uniform like Initialized_Conv1d).
# ---------------------------------------------------------------------------
def init_params(key, nodes, C_pp, C_p, C):
    def xavier(k, shape):
        fan_in, fan_out = shape[-2], shape[-1]
        lim = (6.0 / (fan_in + fan_out)) ** 0.5
        return jax.random.uniform(k, shape, jnp.float32, -lim, lim)

    keys = jax.random.split(key, 4)
    params = {
        "preproc0": xavier(keys[0], (C_pp, C)),          # (Cin, Cout), used as x @ W
        "preproc1": xavier(keys[1], (C_p, C)),
        "concat_conv1": xavier(keys[2], (C_p, 3 * C)),
        "ln_gamma": jnp.ones((3 * C,), jnp.float32),
        "ln_beta": jnp.zeros((3 * C,), jnp.float32),
        "edges": [],
    }
    n_edges = sum(2 + i for i in range(nodes))
    ekeys = jax.random.split(keys[3], 2 * n_edges)
    for e in range(n_edges):
        params["edges"].append(
            {
                "w1": xavier(ekeys[2 * e], (C, C)),
                "w3": xavier(ekeys[2 * e + 1], (3, C, C)),   # taps: l-1, l, l+1
            }
        )
    return params


if __name__ == "__main__":
    nodes, C_pp, C_p, C = 3, 8, 8, 8   # residual requires nodes*C == 3*C
    N, L = 2, 16

    key = jax.random.PRNGKey(0)
    k_s0, k_s1, k_w, k_p = jax.random.split(key, 4)
    s0 = jax.random.normal(k_s0, (N, C_pp, L), jnp.float32)
    s1 = jax.random.normal(k_s1, (N, C_p, L), jnp.float32)

    # w_dag[i] : (2+i, N_OPS) softmax over ops, as produced by the DARTS controller.
    w_dag = [
        jax.nn.softmax(
            jax.random.normal(jax.random.fold_in(k_w, i), (2 + i, N_OPS), jnp.float32),
            axis=-1,
        )
        for i in range(nodes)
    ]

    params = init_params(k_p, nodes, C_pp, C_p, C)

    out = search_cell_forward(params, s0, s1, w_dag, nodes)
    jax.block_until_ready(out)
    assert out.shape == (N, 3 * C, L) and out.dtype == jnp.float32

    ref = search_cell_reference(params, s0, s1, w_dag, nodes)
    max_err = float(jnp.max(jnp.abs(out - ref)))
    assert jnp.allclose(out, ref, rtol=2e-4, atol=2e-4), f"max |err| = {max_err}"

    print("KERNEL_OK")
</pallas_src>

<mosaic_0001>
module attributes {stable_mosaic.version = 11 : i64} {
  func.func @_search_cell_kernel(%arg0: i32, %arg1: memref<9xf32, #tpu.memory_space<smem>>, %arg2: memref<1x8x16xf32, #tpu.memory_space<vmem>>, %arg3: memref<1x8x16xf32, #tpu.memory_space<vmem>>, %arg4: memref<8x8xf32, #tpu.memory_space<vmem>>, %arg5: memref<32x8xf32, #tpu.memory_space<vmem>>, %arg6: memref<24x1xf32, #tpu.memory_space<vmem>>, %arg7: memref<24x1xf32, #tpu.memory_space<vmem>>, %arg8: memref<8x48xf32, #tpu.memory_space<vmem>>, %arg9: memref<8x72xf32, #tpu.memory_space<vmem>>, %arg10: memref<8x96xf32, #tpu.memory_space<vmem>>, %arg11: memref<1x24x16xf32, #tpu.memory_space<vmem>>) attributes {dimension_semantics = [#tpu.dimension_semantics<parallel>], iteration_bounds = array<i64: 2>, scalar_prefetch = 0 : i64, scratch_operands = 0 : i64, tpu.core_type = #tpu.core_type<tc>, window_params = [{transform_indices = @transform_0, window_bounds = array<i64: 9>}, {transform_indices = @transform_1, window_bounds = array<i64: 1, 8, 16>}, {transform_indices = @transform_2, window_bounds = array<i64: 1, 8, 16>}, {pipeline_mode = #tpu.pipeline_mode<synchronous>, transform_indices = @transform_3, window_bounds = array<i64: 8, 8>}, {pipeline_mode = #tpu.pipeline_mode<synchronous>, transform_indices = @transform_4, window_bounds = array<i64: 32, 8>}, {pipeline_mode = #tpu.pipeline_mode<synchronous>, transform_indices = @transform_5, window_bounds = array<i64: 24, 1>}, {pipeline_mode = #tpu.pipeline_mode<synchronous>, transform_indices = @transform_6, window_bounds = array<i64: 24, 1>}, {pipeline_mode = #tpu.pipeline_mode<synchronous>, transform_indices = @transform_7, window_bounds = array<i64: 8, 48>}, {pipeline_mode = #tpu.pipeline_mode<synchronous>, transform_indices = @transform_8, window_bounds = array<i64: 8, 72>}, {pipeline_mode = #tpu.pipeline_mode<synchronous>, transform_indices = @transform_9, window_bounds = array<i64: 8, 96>}, {transform_indices = @transform_10, window_bounds = array<i64: 1, 24, 16>}]} {
    %c0 = arith.constant 0 : index
    %c0_0 = arith.constant 0 : index
    %c0_1 = arith.constant 0 : index
    %0 = vector.load %arg2[%c0, %c0_0, %c0_1] : memref<1x8x16xf32, #tpu.memory_space<vmem>>, vector<1x8x16xf32>
    %1 = vector.shape_cast %0 : vector<1x8x16xf32> to vector<8x16xf32>
    %c0_2 = arith.constant 0 : index
    %c0_3 = arith.constant 0 : index
    %c0_4 = arith.constant 0 : index
    %2 = vector.load %arg3[%c0_2, %c0_3, %c0_4] : memref<1x8x16xf32, #tpu.memory_space<vmem>>, vector<1x8x16xf32>
    %3 = vector.shape_cast %2 : vector<1x8x16xf32> to vector<8x16xf32>
    %c0_5 = arith.constant 0 : index
    %c0_6 = arith.constant 0 : index
    %4 = vector.load %arg4[%c0_5, %c0_6] : memref<8x8xf32, #tpu.memory_space<vmem>>, vector<8x8xf32>
    %cst = arith.constant dense<0.000000e+00> : vector<8x16xf32>
    %5 = tpu.matmul %4, %1, %cst {dimension_numbers = #tpu.dot_dimension_numbers<[1], [0], [0], [1], [0, 0, 1, 1], [], []>} : vector<8x8xf32>, vector<8x16xf32>, vector<8x16xf32> -> vector<8x16xf32>
    %c0_7 = arith.constant 0 : index
    %c0_8 = arith.constant 0 : index
    %6 = vector.load %arg5[%c0_7, %c0_8] : memref<32x8xf32, #tpu.memory_space<vmem>>, vector<32x8xf32>
    %cst_9 = arith.constant dense<0.000000e+00> : vector<32x16xf32>
    %7 = tpu.matmul %6, %3, %cst_9 {dimension_numbers = #tpu.dot_dimension_numbers<[1], [0], [0], [1], [0, 0, 1, 1], [], []>} : vector<32x8xf32>, vector<8x16xf32>, vector<32x16xf32> -> vector<32x16xf32>
    %8 = vector.extract_strided_slice %7 {offsets = [0, 0], sizes = [8, 16], strides = [1, 1]} : vector<32x16xf32> to vector<8x16xf32>
    %9 = vector.extract_strided_slice %7 {offsets = [8, 0], sizes = [24, 16], strides = [1, 1]} : vector<32x16xf32> to vector<24x16xf32>
    %10 = tpu.iota {dimensions = array<i32: 1>} : vector<1x16xi32>
    %c0_i32 = arith.constant 0 : i32
    %11 = vector.broadcast %c0_i32 : i32 to vector<1x16xi32>
    %12 = arith.cmpi sgt, %10, %11 : vector<1x16xi32>
    %c15_i32 = arith.constant 15 : i32
    %13 = vector.broadcast %c15_i32 : i32 to vector<1x16xi32>
    %14 = arith.cmpi slt, %10, %13 : vector<1x16xi32>
    %c1_i32 = arith.constant 1 : i32
    %15 = tpu.dynamic_rotate %5 by %c1_i32 dim 1 : vector<8x16xf32>, i32 -> vector<8x16xf32>
    %c15_i32_10 = arith.constant 15 : i32
    %16 = tpu.dynamic_rotate %5 by %c15_i32_10 dim 1 : vector<8x16xf32>, i32 -> vector<8x16xf32>
    %cst_11 = arith.constant 0.000000e+00 : f32
    %17 = vector.shape_cast %12 : vector<1x16xi1> to vector<1x16xi1>
    %18 = vector.broadcast %17 : vector<1x16xi1> to vector<8x16xi1>
    %19 = vector.broadcast %cst_11 : f32 to vector<8x16xf32>
    %20 = arith.select %18, %15, %19 : vector<8x16xi1>, vector<8x16xf32>
    %cst_12 = arith.constant 0.000000e+00 : f32
    %21 = vector.shape_cast %14 : vector<1x16xi1> to vector<1x16xi1>
    %22 = vector.broadcast %21 : vector<1x16xi1> to vector<8x16xi1>
    %23 = vector.broadcast %cst_12 : f32 to vector<8x16xf32>
    %24 = arith.select %22, %16, %23 : vector<8x16xi1>, vector<8x16xf32>
    %cst_13 = arith.constant -3.40282347E+38 : f32
    %25 = vector.shape_cast %12 : vector<1x16xi1> to vector<1x16xi1>
    %26 = vector.broadcast %25 : vector<1x16xi1> to vector<8x16xi1>
    %27 = vector.broadcast %cst_13 : f32 to vector<8x16xf32>
    %28 = arith.select %26, %15, %27 : vector<8x16xi1>, vector<8x16xf32>
    %29 = arith.maximumf %28, %5 : vector<8x16xf32>
    %cst_14 = arith.constant -3.40282347E+38 : f32
    %30 = vector.shape_cast %14 : vector<1x16xi1> to vector<1x16xi1>
    %31 = vector.broadcast %30 : vector<1x16xi1> to vector<8x16xi1>
    %32 = vector.broadcast %cst_14 : f32 to vector<8x16xf32>
    %33 = arith.select %31, %16, %32 : vector<8x16xi1>, vector<8x16xf32>
    %34 = arith.maximumf %29, %33 : vector<8x16xf32>
    %35 = tpu.concatenate %20, %5, %24 in 0 : vector<8x16xf32>, vector<8x16xf32>, vector<8x16xf32> -> vector<24x16xf32>
    %c1_i32_15 = arith.constant 1 : i32
    %36 = tpu.dynamic_rotate %8 by %c1_i32_15 dim 1 : vector<8x16xf32>, i32 -> vector<8x16xf32>
    %c15_i32_16 = arith.constant 15 : i32
    %37 = tpu.dynamic_rotate %8 by %c15_i32_16 dim 1 : vector<8x16xf32>, i32 -> vector<8x16xf32>
    %cst_17 = arith.constant 0.000000e+00 : f32
    %38 = vector.shape_cast %12 : vector<1x16xi1> to vector<1x16xi1>
    %39 = vector.broadcast %38 : vector<1x16xi1> to vector<8x16xi1>
    %40 = vector.broadcast %cst_17 : f32 to vector<8x16xf32>
    %41 = arith.select %39, %36, %40 : vector<8x16xi1>, vector<8x16xf32>
    %cst_18 = arith.constant 0.000000e+00 : f32
    %42 = vector.shape_cast %14 : vector<1x16xi1> to vector<1x16xi1>
    %43 = vector.broadcast %42 : vector<1x16xi1> to vector<8x16xi1>
    %44 = vector.broadcast %cst_18 : f32 to vector<8x16xf32>
    %45 = arith.select %43, %37, %44 : vector<8x16xi1>, vector<8x16xf32>
    %cst_19 = arith.constant -3.40282347E+38 : f32
    %46 = vector.shape_cast %12 : vector<1x16xi1> to vector<1x16xi1>
    %47 = vector.broadcast %46 : vector<1x16xi1> to vector<8x16xi1>
    %48 = vector.broadcast %cst_19 : f32 to vector<8x16xf32>
    %49 = arith.select %47, %36, %48 : vector<8x16xi1>, vector<8x16xf32>
    %50 = arith.maximumf %49, %8 : vector<8x16xf32>
    %cst_20 = arith.constant -3.40282347E+38 : f32
    %51 = vector.shape_cast %14 : vector<1x16xi1> to vector<1x16xi1>
    %52 = vector.broadcast %51 : vector<1x16xi1> to vector<8x16xi1>
    %53 = vector.broadcast %cst_20 : f32 to vector<8x16xf32>
    %54 = arith.select %52, %37, %53 : vector<8x16xi1>, vector<8x16xf32>
    %55 = arith.maximumf %50, %54 : vector<8x16xf32>
    %56 = tpu.concatenate %41, %8, %45 in 0 : vector<8x16xf32>, vector<8x16xf32>, vector<8x16xf32> -> vector<24x16xf32>
    %57 = tpu.concatenate %35, %56 in 0 : vector<24x16xf32>, vector<24x16xf32> -> vector<48x16xf32>
    %c0_21 = arith.constant 0 : index
    %c0_22 = arith.constant 0 : index
    %58 = vector.load %arg8[%c0_21, %c0_22] : memref<8x48xf32, #tpu.memory_space<vmem>>, vector<8x48xf32>
    %cst_23 = arith.constant dense<0.000000e+00> : vector<8x16xf32>
    %59 = tpu.matmul %58, %57, %cst_23 {dimension_numbers = #tpu.dot_dimension_numbers<[1], [0], [0], [1], [0, 0, 1, 1], [], []>} : vector<8x48xf32>, vector<48x16xf32>, vector<8x16xf32> -> vector<8x16xf32>
    %c0_24 = arith.constant 0 : index
    %60 = memref.load %arg1[%c0_24] : memref<9xf32, #tpu.memory_space<smem>>
    %61 = vector.broadcast %60 : f32 to vector<8x16xf32>
    %62 = arith.mulf %61, %34 : vector<8x16xf32>
    %63 = arith.addf %59, %62 : vector<8x16xf32>
    %c1 = arith.constant 1 : index
    %64 = memref.load %arg1[%c1] : memref<9xf32, #tpu.memory_space<smem>>
    %65 = vector.broadcast %64 : f32 to vector<8x16xf32>
    %66 = arith.mulf %65, %55 : vector<8x16xf32>
    %67 = arith.addf %63, %66 : vector<8x16xf32>
    %c1_i32_25 = arith.constant 1 : i32
    %68 = tpu.dynamic_rotate %67 by %c1_i32_25 dim 1 : vector<8x16xf32>, i32 -> vector<8x16xf32>
    %c15_i32_26 = arith.constant 15 : i32
    %69 = tpu.dynamic_rotate %67 by %c15_i32_26 dim 1 : vector<8x16xf32>, i32 -> vector<8x16xf32>
    %cst_27 = arith.constant 0.000000e+00 : f32
    %70 = vector.shape_cast %12 : vector<1x16xi1> to vector<1x16xi1>
    %71 = vector.broadcast %70 : vector<1x16xi1> to vector<8x16xi1>
    %72 = vector.broadcast %cst_27 : f32 to vector<8x16xf32>
    %73 = arith.select %71, %68, %72 : vector<8x16xi1>, vector<8x16xf32>
    %cst_28 = arith.constant 0.000000e+00 : f32
    %74 = vector.shape_cast %14 : vector<1x16xi1> to vector<1x16xi1>
    %75 = vector.broadcast %74 : vector<1x16xi1> to vector<8x16xi1>
    %76 = vector.broadcast %cst_28 : f32 to vector<8x16xf32>
    %77 = arith.select %75, %69, %76 : vector<8x16xi1>, vector<8x16xf32>
    %cst_29 = arith.constant -3.40282347E+38 : f32
    %78 = vector.shape_cast %12 : vector<1x16xi1> to vector<1x16xi1>
    %79 = vector.broadcast %78 : vector<1x16xi1> to vector<8x16xi1>
    %80 = vector.broadcast %cst_29 : f32 to vector<8x16xf32>
    %81 = arith.select %79, %68, %80 : vector<8x16xi1>, vector<8x16xf32>
    %82 = arith.maximumf %81, %67 : vector<8x16xf32>
    %cst_30 = arith.constant -3.40282347E+38 : f32
    %83 = vector.shape_cast %14 : vector<1x16xi1> to vector<1x16xi1>
    %84 = vector.broadcast %83 : vector<1x16xi1> to vector<8x16xi1>
    %85 = vector.broadcast %cst_30 : f32 to vector<8x16xf32>
    %86 = arith.select %84, %69, %85 : vector<8x16xi1>, vector<8x16xf32>
    %87 = arith.maximumf %82, %86 : vector<8x16xf32>
    %88 = tpu.concatenate %73, %67, %77 in 0 : vector<8x16xf32>, vector<8x16xf32>, vector<8x16xf32> -> vector<24x16xf32>
    %89 = tpu.concatenate %35, %56, %88 in 0 : vector<24x16xf32>, vector<24x16xf32>, vector<24x16xf32> -> vector<72x16xf32>
    %c0_31 = arith.constant 0 : index
    %c0_32 = arith.constant 0 : index
    %90 = vector.load %arg9[%c0_31, %c0_32] : memref<8x72xf32, #tpu.memory_space<vmem>>, vector<8x72xf32>
    %cst_33 = arith.constant dense<0.000000e+00> : vector<8x16xf32>
    %91 = tpu.matmul %90, %89, %cst_33 {dimension_numbers = #tpu.dot_dimension_numbers<[1], [0], [0], [1], [0, 0, 1, 1], [], []>} : vector<8x72xf32>, vector<72x16xf32>, vector<8x16xf32> -> vector<8x16xf32>
    %c2 = arith.constant 2 : index
    %92 = memref.load %arg1[%c2] : memref<9xf32, #tpu.memory_space<smem>>
    %93 = vector.broadcast %92 : f32 to vector<8x16xf32>
    %94 = arith.mulf %93, %34 : vector<8x16xf32>
    %95 = arith.addf %91, %94 : vector<8x16xf32>
    %c3 = arith.constant 3 : index
    %96 = memref.load %arg1[%c3] : memref<9xf32, #tpu.memory_space<smem>>
    %97 = vector.broadcast %96 : f32 to vector<8x16xf32>
    %98 = arith.mulf %97, %55 : vector<8x16xf32>
    %99 = arith.addf %95, %98 : vector<8x16xf32>
    %c4 = arith.constant 4 : index
    %100 = memref.load %arg1[%c4] : memref<9xf32, #tpu.memory_space<smem>>
    %101 = vector.broadcast %100 : f32 to vector<8x16xf32>
    %102 = arith.mulf %101, %87 : vector<8x16xf32>
    %103 = arith.addf %99, %102 : vector<8x16xf32>
    %c1_i32_34 = arith.constant 1 : i32
    %104 = tpu.dynamic_rotate %103 by %c1_i32_34 dim 1 : vector<8x16xf32>, i32 -> vector<8x16xf32>
    %c15_i32_35 = arith.constant 15 : i32
    %105 = tpu.dynamic_rotate %103 by %c15_i32_35 dim 1 : vector<8x16xf32>, i32 -> vector<8x16xf32>
    %cst_36 = arith.constant 0.000000e+00 : f32
    %106 = vector.shape_cast %12 : vector<1x16xi1> to vector<1x16xi1>
    %107 = vector.broadcast %106 : vector<1x16xi1> to vector<8x16xi1>
    %108 = vector.broadcast %cst_36 : f32 to vector<8x16xf32>
    %109 = arith.select %107, %104, %108 : vector<8x16xi1>, vector<8x16xf32>
    %cst_37 = arith.constant 0.000000e+00 : f32
    %110 = vector.shape_cast %14 : vector<1x16xi1> to vector<1x16xi1>
    %111 = vector.broadcast %110 : vector<1x16xi1> to vector<8x16xi1>
    %112 = vector.broadcast %cst_37 : f32 to vector<8x16xf32>
    %113 = arith.select %111, %105, %112 : vector<8x16xi1>, vector<8x16xf32>
    %cst_38 = arith.constant -3.40282347E+38 : f32
    %114 = vector.shape_cast %12 : vector<1x16xi1> to vector<1x16xi1>
    %115 = vector.broadcast %114 : vector<1x16xi1> to vector<8x16xi1>
    %116 = vector.broadcast %cst_38 : f32 to vector<8x16xf32>
    %117 = arith.select %115, %104, %116 : vector<8x16xi1>, vector<8x16xf32>
    %118 = arith.maximumf %117, %103 : vector<8x16xf32>
    %cst_39 = arith.constant -3.40282347E+38 : f32
    %119 = vector.shape_cast %14 : vector<1x16xi1> to vector<1x16xi1>
    %120 = vector.broadcast %119 : vector<1x16xi1> to vector<8x16xi1>
    %121 = vector.broadcast %cst_39 : f32 to vector<8x16xf32>
    %122 = arith.select %120, %105, %121 : vector<8x16xi1>, vector<8x16xf32>
    %123 = arith.maximumf %118, %122 : vector<8x16xf32>
    %124 = tpu.concatenate %109, %103, %113 in 0 : vector<8x16xf32>, vector<8x16xf32>, vector<8x16xf32> -> vector<24x16xf32>
    %125 = tpu.concatenate %35, %56, %88, %124 in 0 : vector<24x16xf32>, vector<24x16xf32>, vector<24x16xf32>, vector<24x16xf32> -> vector<96x16xf32>
    %c0_40 = arith.constant 0 : index
    %c0_41 = arith.constant 0 : index
    %126 = vector.load %arg10[%c0_40, %c0_41] : memref<8x96xf32, #tpu.memory_space<vmem>>, vector<8x96xf32>
    %cst_42 = arith.constant dense<0.000000e+00> : vector<8x16xf32>
    %127 = tpu.matmul %126, %125, %cst_42 {dimension_numbers = #tpu.dot_dimension_numbers<[1], [0], [0], [1], [0, 0, 1, 1], [], []>} : vector<8x96xf32>, vector<96x16xf32>, vector<8x16xf32> -> vector<8x16xf32>
    %c5 = arith.constant 5 : index
    %128 = memref.load %arg1[%c5] : memref<9xf32, #tpu.memory_space<smem>>
    %129 = vector.broadcast %128 : f32 to vector<8x16xf32>
    %130 = arith.mulf %129, %34 : vector<8x16xf32>
    %131 = arith.addf %127, %130 : vector<8x16xf32>
    %c6 = arith.constant 6 : index
    %132 = memref.load %arg1[%c6] : memref<9xf32, #tpu.memory_space<smem>>
    %133 = vector.broadcast %132 : f32 to vector<8x16xf32>
    %134 = arith.mulf %133, %55 : vector<8x16xf32>
    %135 = arith.addf %131, %134 : vector<8x16xf32>
    %c7 = arith.constant 7 : index
    %136 = memref.load %arg1[%c7] : memref<9xf32, #tpu.memory_space<smem>>
    %137 = vector.broadcast %136 : f32 to vector<8x16xf32>
    %138 = arith.mulf %137, %87 : vector<8x16xf32>
    %139 = arith.addf %135, %138 : vector<8x16xf32>
    %c8 = arith.constant 8 : index
    %140 = memref.load %arg1[%c8] : memref<9xf32, #tpu.memory_space<smem>>
    %141 = vector.broadcast %140 : f32 to vector<8x16xf32>
    %142 = arith.mulf %141, %123 : vector<8x16xf32>
    %143 = arith.addf %139, %142 : vector<8x16xf32>
    %144 = tpu.concatenate %67, %103, %143 in 0 : vector<8x16xf32>, vector<8x16xf32>, vector<8x16xf32> -> vector<24x16xf32>
    %145 = arith.addf %144, %9 : vector<24x16xf32>
    %cst_43 = arith.constant dense<0.000000e+00> : vector<16xf32>
    %146 = vector.multi_reduction <add>, %145, %cst_43 [0] : vector<24x16xf32> to vector<16xf32>
    %147 = vector.shape_cast %146 : vector<16xf32> to vector<1x16xf32>
    %cst_44 = arith.constant 2.400000e+01 : f32
    %148 = vector.broadcast %cst_44 : f32 to vector<1x16xf32>
    %149 = arith.divf %147, %148 : vector<1x16xf32>
    %150 = vector.broadcast %149 : vector<1x16xf32> to vector<24x16xf32>
    %151 = arith.subf %145, %150 : vector<24x16xf32>
    %152 = arith.mulf %151, %151 : vector<24x16xf32>
    %cst_45 = arith.constant dense<0.000000e+00> : vector<16xf32>
    %153 = vector.multi_reduction <add>, %152, %cst_45 [0] : vector<24x16xf32> to vector<16xf32>
    %154 = vector.shape_cast %153 : vector<16xf32> to vector<1x16xf32>
    %cst_46 = arith.constant 2.400000e+01 : f32
    %155 = vector.broadcast %cst_46 : f32 to vector<1x16xf32>
    %156 = arith.divf %154, %155 : vector<1x16xf32>
    %cst_47 = arith.constant 9.99999996E-13 : f32
    %157 = vector.broadcast %cst_47 : f32 to vector<1x16xf32>
    %158 = arith.addf %156, %157 : vector<1x16xf32>
    %159 = math.rsqrt %158 : vector<1x16xf32>
    %160 = vector.broadcast %159 : vector<1x16xf32> to vector<24x16xf32>
    %161 = arith.mulf %151, %160 : vector<24x16xf32>
    %c0_48 = arith.constant 0 : index
    %c0_49 = arith.constant 0 : index
    %162 = vector.load %arg6[%c0_48, %c0_49] : memref<24x1xf32, #tpu.memory_space<vmem>>, vector<24x1xf32>
    %163 = vector.broadcast %162 : vector<24x1xf32> to vector<24x16xf32>
    %164 = arith.mulf %161, %163 : vector<24x16xf32>
    %c0_50 = arith.constant 0 : index
    %c0_51 = arith.constant 0 : index
    %165 = vector.load %arg7[%c0_50, %c0_51] : memref<24x1xf32, #tpu.memory_space<vmem>>, vector<24x1xf32>
    %166 = vector.broadcast %165 : vector<24x1xf32> to vector<24x16xf32>
    %167 = arith.addf %164, %166 : vector<24x16xf32>
    %c0_52 = arith.constant 0 : index
    %c0_53 = arith.constant 0 : index
    %c0_54 = arith.constant 0 : index
    %168 = vector.load %arg11[%c0_52, %c0_53, %c0_54] : memref<1x24x16xf32, #tpu.memory_space<vmem>>, vector<1x24x16xf32>
    %169 = vector.shape_cast %168 : vector<1x24x16xf32> to vector<24x16xf32>
    %170 = vector.shape_cast %167 : vector<24x16xf32> to vector<1x24x16xf32>
    tpu.vector_store %arg11[%c0_52, %c0_53, %c0_54], %170 {strides = array<i32>} : memref<1x24x16xf32, #tpu.memory_space<vmem>>, vector<1x24x16xf32>,
    return
  }
  func.func @transform_0(%arg0: i32) -> i32 {
    %c0_i32 = arith.constant 0 : i32
    %c0_i32_0 = arith.constant 0 : i32
    return %c0_i32 : i32
  }
  func.func @transform_1(%arg0: i32) -> (i32, i32, i32) {
    %c0_i32 = arith.constant 0 : i32
    %c0_i32_0 = arith.constant 0 : i32
    %c0_i32_1 = arith.constant 0 : i32
    return %arg0, %c0_i32, %c0_i32_0 : i32, i32, i32
  }
  func.func @transform_2(%arg0: i32) -> (i32, i32, i32) {
    %c0_i32 = arith.constant 0 : i32
    %c0_i32_0 = arith.constant 0 : i32
    %c0_i32_1 = arith.constant 0 : i32
    return %arg0, %c0_i32, %c0_i32_0 : i32, i32, i32
  }
  func.func @transform_3(%arg0: i32) -> (i32, i32) {
    %c0_i32 = arith.constant 0 : i32
    %c0_i32_0 = arith.constant 0 : i32
    %c0_i32_1 = arith.constant 0 : i32
    return %c0_i32, %c0_i32_0 : i32, i32
  }
  func.func @transform_4(%arg0: i32) -> (i32, i32) {
    %c0_i32 = arith.constant 0 : i32
    %c0_i32_0 = arith.constant 0 : i32
    %c0_i32_1 = arith.constant 0 : i32
    return %c0_i32, %c0_i32_0 : i32, i32
  }
  func.func @transform_5(%arg0: i32) -> (i32, i32) {
    %c0_i32 = arith.constant 0 : i32
    %c0_i32_0 = arith.constant 0 : i32
    %c0_i32_1 = arith.constant 0 : i32
    return %c0_i32, %c0_i32_0 : i32, i32
  }
  func.func @transform_6(%arg0: i32) -> (i32, i32) {
    %c0_i32 = arith.constant 0 : i32
    %c0_i32_0 = arith.constant 0 : i32
    %c0_i32_1 = arith.constant 0 : i32
    return %c0_i32, %c0_i32_0 : i32, i32
  }
  func.func @transform_7(%arg0: i32) -> (i32, i32) {
    %c0_i32 = arith.constant 0 : i32
    %c0_i32_0 = arith.constant 0 : i32
    %c0_i32_1 = arith.constant 0 : i32
    return %c0_i32, %c0_i32_0 : i32, i32
  }
  func.func @transform_8(%arg0: i32) -> (i32, i32) {
    %c0_i32 = arith.constant 0 : i32
    %c0_i32_0 = arith.constant 0 : i32
    %c0_i32_1 = arith.constant 0 : i32
    return %c0_i32, %c0_i32_0 : i32, i32
  }
  func.func @transform_9(%arg0: i32) -> (i32, i32) {
    %c0_i32 = arith.constant 0 : i32
    %c0_i32_0 = arith.constant 0 : i32
    %c0_i32_1 = arith.constant 0 : i32
    return %c0_i32, %c0_i32_0 : i32, i32
  }
  func.func @transform_10(%arg0: i32) -> (i32, i32, i32) {
    %c0_i32 = arith.constant 0 : i32
    %c0_i32_0 = arith.constant 0 : i32
    %c0_i32_1 = arith.constant 0 : i32
    return %arg0, %c0_i32, %c0_i32_0 : i32, i32, i32
  }
}

</mosaic_0001>

<llo_original>
// kernel: tpu_custom_call.1
$region0: #{tpu_custom_call.1}
  #allocation0 [shape = 'u32[]', space=smem, size = 0x4, offset = 0x4, fixed_abs, tag = 'smem constant byte address 0x4 - core index']
  #allocation1 [shape = 'u32[144,128]{1,0:T(1,128)}', space=vmem, size = 0x12000, scoped, tag = 'internal scratch']
  %s0 = inlined_call_operand.vmem [shape: f32[9], index: 0, kind: input, shape index: {}]
  %s1 = inlined_call_operand.vmem [shape: f32[2,8,16], index: 1, kind: input, shape index: {}]
  %s2 = inlined_call_operand.vmem [shape: f32[2,8,16], index: 2, kind: input, shape index: {}]
  %s3 = inlined_call_operand.vmem [shape: f32[8,8], index: 3, kind: input, shape index: {}]
  %s4 = inlined_call_operand.vmem [shape: f32[32,8], index: 4, kind: input, shape index: {}]
  %s5 = inlined_call_operand.vmem [shape: f32[24,1], index: 5, kind: input, shape index: {}]
  %s6 = inlined_call_operand.vmem [shape: f32[24,1], index: 6, kind: input, shape index: {}]
  %s7 = inlined_call_operand.vmem [shape: f32[8,48], index: 7, kind: input, shape index: {}]
  %s8 = inlined_call_operand.vmem [shape: f32[8,72], index: 8, kind: input, shape index: {}]
  %s9 = inlined_call_operand.vmem [shape: f32[8,96], index: 9, kind: input, shape index: {}]
  %s10 = inlined_call_operand.vmem [shape: f32[2,24,16], index: 10, kind: output, shape index: {}]
  %s11 = sld [smem:[#allocation0]]
  $region77: #{tpu_custom_call.1} parent=0
    _
  %s13 = ssub.s32 1, %s11
  %s14 = scalar_select 0, %s13, %s11
  $region1: #{tpu_custom_call.1} parent=0
    #allocation2 [shape = 'u8[512]{0}', space=smem, size = 0x200, scoped, tag = 'input window, operand 0, single buffered']
    #allocation3 [shape = 's32[2]{0}', space=sflag, size = 0x8, scoped, tag = 'scoped memory for tpu_custom_call.1']
    %15 = vsyncpa [#allocation3], 0
    loop: start=0, step=1, limit=4
    $region2: #{tpu_custom_call.1} parent=1 // loop_pre_header
      _
    $region3: #{tpu_custom_call.1} parent=1 // loop_header
      %s17 = sphi 0, %s21
      %p18 = scmp.ge.s32.totalorder %s17, 4
      %s25 = sphi 0, %s25
      %s27 = sphi 0, %s25
      %s28 = sphi 0, %s27
      %s42 = sphi 0, %s28
      %s48 = sphi 0, %s50
      %s51 = sphi 0, %s48
      %s52 = sphi 0, %s51
      %s68 = sphi 0, %s52
      %s74 = sphi 0, %s76
      %s77 = sphi 0, %s74
      %s78 = sphi 0, %s77
      %s94 = sphi 0, %s78
      %s98 = sphi 0, %s98
      %s100 = sphi 0, %s98
      %s101 = sphi 0, %s100
      %s115 = sphi 0, %s101
      %s119 = sphi 0, %s119
      %s121 = sphi 0, %s119
      %s122 = sphi 0, %s121
      %s136 = sphi 0, %s122
      %s140 = sphi 0, %s140
      %s142 = sphi 0, %s140
      %s143 = sphi 0, %s142
      %s157 = sphi 0, %s143
      %s161 = sphi 0, %s161
      %s163 = sphi 0, %s161
      %s164 = sphi 0, %s163
      %s178 = sphi 0, %s164
      %s182 = sphi 0, %s182
      %s184 = sphi 0, %s182
      %s185 = sphi 0, %s184
      %s199 = sphi 0, %s185
      %s203 = sphi 0, %s203
      %s205 = sphi 0, %s203
      %s206 = sphi 0, %s205
      %s220 = sphi 0, %s206
      %s224 = sphi 0, %s224
      %s226 = sphi 0, %s224
      %s227 = sphi 0, %s226
      %s241 = sphi 0, %s227
      %s247 = sphi 0, %s249
      %s250 = sphi 0, %s247
      %s251 = sphi 0, %s250
      %s267 = sphi 0, %s251
    $region4: #{tpu_custom_call.1} parent=1 // loop_header_branch
      %20 = sbr.rel (%p18) target = $region8
    $region5: #{tpu_custom_call.1} parent=1 // loop_body
      %s22 = ssub.s32 %s17, 1
      %s23 = ssub.s32 %s17, 2
      %s24 = sadd.s32 %s17, 1
      %s26 = sadd.s32 %s25, 1
      %p29 = scmp.eq.s32.totalorder %s17, 1
      %p30 = scmp.ne.s32.totalorder %s25, %s27
      %p31 = scmp.eq.s32.totalorder %s17, 0
      %p32 = por %p30, %p31
      %p33 = scmp.ne.s32.totalorder %s25, %s27
      %p34 = scmp.eq.s32.totalorder %s22, 1
      %p35 = por %p33, %p34
      %p36 = scmp.ne.s32.totalorder %s27, %s28
      %p37 = scmp.eq.s32.totalorder %s22, 0
      %p38 = por %p36, %p37
      %p39 = scmp.ne.s32.totalorder %s27, %s28
      %p40 = scmp.eq.s32.totalorder %s23, 1
      %p41 = por %p39, %p40
      %p43 = scmp.ne.s32.totalorder %s28, %s42
      %p44 = scmp.eq.s32.totalorder %s23, 0
      %p45 = por %p43, %p44
      %s46 = ssub.s32 %s17, %s24
      %p47 = scmp.eq.s32.totalorder %s46, 0
      %s49 = sadd.s32 %s48, 1
      %s50 = scalar_select %p47, %s48, %s49
      %p53 = pneg %p47
      %p54 = scmp.eq.s32.totalorder %s17, 1
      %p55 = por %p53, %p54
      %p56 = scmp.ne.s32.totalorder %s48, %s51
      %p57 = scmp.eq.s32.totalorder %s17, 0
      %p58 = por %p56, %p57
      %p59 = scmp.ne.s32.totalorder %s48, %s51
      %p60 = scmp.eq.s32.totalorder %s22, 1
      %p61 = por %p59, %p60
      %p62 = scmp.ne.s32.totalorder %s51, %s52
      %p63 = scmp.eq.s32.totalorder %s22, 0
      %p64 = por %p62, %p63
      %p65 = scmp.ne.s32.totalorder %s51, %s52
      %p66 = scmp.eq.s32.totalorder %s23, 1
      %p67 = por %p65, %p66
      %p69 = scmp.ne.s32.totalorder %s52, %s68
      %p70 = scmp.eq.s32.totalorder %s23, 0
      %p71 = por %p69, %p70
      %s72 = ssub.s32 %s17, %s24
      %p73 = scmp.eq.s32.totalorder %s72, 0
      %s75 = sadd.s32 %s74, 1
      %s76 = scalar_select %p73, %s74, %s75
      %p79 = pneg %p73
      %p80 = scmp.eq.s32.totalorder %s17, 1
      %p81 = por %p79, %p80
      %p82 = scmp.ne.s32.totalorder %s74, %s77
      %p83 = scmp.eq.s32.totalorder %s17, 0
      %p84 = por %p82, %p83
      %p85 = scmp.ne.s32.totalorder %s74, %s77
      %p86 = scmp.eq.s32.totalorder %s22, 1
      %p87 = por %p85, %p86
      %p88 = scmp.ne.s32.totalorder %s77, %s78
      %p89 = scmp.eq.s32.totalorder %s22, 0
      %p90 = por %p88, %p89
      %p91 = scmp.ne.s32.totalorder %s77, %s78
      %p92 = scmp.eq.s32.totalorder %s23, 1
      %p93 = por %p91, %p92
      %p95 = scmp.ne.s32.totalorder %s78, %s94
      %p96 = scmp.eq.s32.totalorder %s23, 0
      %p97 = por %p95, %p96
      %s99 = sadd.s32 %s98, 1
      %p102 = scmp.eq.s32.totalorder %s17, 1
      %p103 = scmp.ne.s32.totalorder %s98, %s100
      %p104 = scmp.eq.s32.totalorder %s17, 0
      %p105 = por %p103, %p104
      %p106 = scmp.ne.s32.totalorder %s98, %s100
      %p107 = scmp.eq.s32.totalorder %s22, 1
      %p108 = por %p106, %p107
      %p109 = scmp.ne.s32.totalorder %s100, %s101
      %p110 = scmp.eq.s32.totalorder %s22, 0
      %p111 = por %p109, %p110
      %p112 = scmp.ne.s32.totalorder %s100, %s101
      %p113 = scmp.eq.s32.totalorder %s23, 1
      %p114 = por %p112, %p113
      %p116 = scmp.ne.s32.totalorder %s101, %s115
      %p117 = scmp.eq.s32.totalorder %s23, 0
      %p118 = por %p116, %p117
      %s120 = sadd.s32 %s119, 1
      %p123 = scmp.eq.s32.totalorder %s17, 1
      %p124 = scmp.ne.s32.totalorder %s119, %s121
      %p125 = scmp.eq.s32.totalorder %s17, 0
      %p126 = por %p124, %p125
      %p127 = scmp.ne.s32.totalorder %s119, %s121
      %p128 = scmp.eq.s32.totalorder %s22, 1
      %p129 = por %p127, %p128
      %p130 = scmp.ne.s32.totalorder %s121, %s122
      %p131 = scmp.eq.s32.totalorder %s22, 0
      %p132 = por %p130, %p131
      %p133 = scmp.ne.s32.totalorder %s121, %s122
      %p134 = scmp.eq.s32.totalorder %s23, 1
      %p135 = por %p133, %p134
      %p137 = scmp.ne.s32.totalorder %s122, %s136
      %p138 = scmp.eq.s32.totalorder %s23, 0
      %p139 = por %p137, %p138
      %s141 = sadd.s32 %s140, 1
      %p144 = scmp.eq.s32.totalorder %s17, 1
      %p145 = scmp.ne.s32.totalorder %s140, %s142
      %p146 = scmp.eq.s32.totalorder %s17, 0
      %p147 = por %p145, %p146
      %p148 = scmp.ne.s32.totalorder %s140, %s142
      %p149 = scmp.eq.s32.totalorder %s22, 1
      %p150 = por %p148, %p149
      %p151 = scmp.ne.s32.totalorder %s142, %s143
      %p152 = scmp.eq.s32.totalorder %s22, 0
      %p153 = por %p151, %p152
      %p154 = scmp.ne.s32.totalorder %s142, %s143
      %p155 = scmp.eq.s32.totalorder %s23, 1
      %p156 = por %p154, %p155
      %p158 = scmp.ne.s32.totalorder %s143, %s157
      %p159 = scmp.eq.s32.totalorder %s23, 0
      %p160 = por %p158, %p159
      %s162 = sadd.s32 %s161, 1
      %p165 = scmp.eq.s32.totalorder %s17, 1
      %p166 = scmp.ne.s32.totalorder %s161, %s163
      %p167 = scmp.eq.s32.totalorder %s17, 0
      %p168 = por %p166, %p167
      %p169 = scmp.ne.s32.totalorder %s161, %s163
      %p170 = scmp.eq.s32.totalorder %s22, 1
      %p171 = por %p169, %p170
      %p172 = scmp.ne.s32.totalorder %s163, %s164
      %p173 = scmp.eq.s32.totalorder %s22, 0
      %p174 = por %p172, %p173
      %p175 = scmp.ne.s32.totalorder %s163, %s164
      %p176 = scmp.eq.s32.totalorder %s23, 1
      %p177 = por %p175, %p176
      %p179 = scmp.ne.s32.totalorder %s164, %s178
      %p180 = scmp.eq.s32.totalorder %s23, 0
      %p181 = por %p179, %p180
      %s183 = sadd.s32 %s182, 1
      %p186 = scmp.eq.s32.totalorder %s17, 1
      %p187 = scmp.ne.s32.totalorder %s182, %s184
      %p188 = scmp.eq.s32.totalorder %s17, 0
      %p189 = por %p187, %p188
      %p190 = scmp.ne.s32.totalorder %s182, %s184
      %p191 = scmp.eq.s32.totalorder %s22, 1
      %p192 = por %p190, %p191
      %p193 = scmp.ne.s32.totalorder %s184, %s185
      %p194 = scmp.eq.s32.totalorder %s22, 0
      %p195 = por %p193, %p194
      %p196 = scmp.ne.s32.totalorder %s184, %s185
      %p197 = scmp.eq.s32.totalorder %s23, 1
      %p198 = por %p196, %p197
      %p200 = scmp.ne.s32.totalorder %s185, %s199
      %p201 = scmp.eq.s32.totalorder %s23, 0
      %p202 = por %p200, %p201
      %s204 = sadd.s32 %s203, 1
      %p207 = scmp.eq.s32.totalorder %s17, 1
      %p208 = scmp.ne.s32.totalorder %s203, %s205
      %p209 = scmp.eq.s32.totalorder %s17, 0
      %p210 = por %p208, %p209
      %p211 = scmp.ne.s32.totalorder %s203, %s205
      %p212 = scmp.eq.s32.totalorder %s22, 1
      %p213 = por %p211, %p212
      %p214 = scmp.ne.s32.totalorder %s205, %s206
      %p215 = scmp.eq.s32.totalorder %s22, 0
      %p216 = por %p214, %p215
      %p217 = scmp.ne.s32.totalorder %s205, %s206
      %p218 = scmp.eq.s32.totalorder %s23, 1
      %p219 = por %p217, %p218
      %p221 = scmp.ne.s32.totalorder %s206, %s220
      %p222 = scmp.eq.s32.totalorder %s23, 0
      %p223 = por %p221, %p222
      %s225 = sadd.s32 %s224, 1
      %p228 = scmp.eq.s32.totalorder %s17, 1
      %p229 = scmp.ne.s32.totalorder %s224, %s226
      %p230 = scmp.eq.s32.totalorder %s17, 0
      %p231 = por %p229, %p230
      %p232 = scmp.ne.s32.totalorder %s224, %s226
      %p233 = scmp.eq.s32.totalorder %s22, 1
      %p234 = por %p232, %p233
      %p235 = scmp.ne.s32.totalorder %s226, %s227
      %p236 = scmp.eq.s32.totalorder %s22, 0
      %p237 = por %p235, %p236
      %p238 = scmp.ne.s32.totalorder %s226, %s227
      %p239 = scmp.eq.s32.totalorder %s23, 1
      %p240 = por %p238, %p239
      %p242 = scmp.ne.s32.totalorder %s227, %s241
      %p243 = scmp.eq.s32.totalorder %s23, 0
      %p244 = por %p242, %p243
      %s245 = ssub.s32 %s17, %s24
      %p246 = scmp.eq.s32.totalorder %s245, 0
      %s248 = sadd.s32 %s247, 1
      %s249 = scalar_select %p246, %s247, %s248
      %p252 = pneg %p246
      %p253 = scmp.eq.s32.totalorder %s17, 1
      %p254 = por %p252, %p253
      %p255 = scmp.ne.s32.totalorder %s247, %s250
      %p256 = scmp.eq.s32.totalorder %s17, 0
      %p257 = por %p255, %p256
      %p258 = scmp.ne.s32.totalorder %s247, %s250
      %p259 = scmp.eq.s32.totalorder %s22, 1
      %p260 = por %p258, %p259
      %p261 = scmp.ne.s32.totalorder %s250, %s251
      %p262 = scmp.eq.s32.totalorder %s22, 0
      %p263 = por %p261, %p262
      %p264 = scmp.ne.s32.totalorder %s250, %s251
      %p265 = scmp.eq.s32.totalorder %s23, 1
      %p266 = por %p264, %p265
      %p268 = scmp.ne.s32.totalorder %s251, %s267
      %p269 = scmp.eq.s32.totalorder %s23, 0
      %p270 = por %p268, %p269
      %p271 = scmp.le.s32.totalorder 1, %s17
      %p272 = scmp.lt.s32.totalorder %s17, 3
      %p273 = pnand %p271, %p272
      %p274 = pneg %p273
      // Predicated region
      $region9: #{tpu_custom_call.1} parent=5 // pred_check
        _
      $region10: #{tpu_custom_call.1} parent=5 // pred_check_branch
        %276 = sbr.rel (%p273) target = $region12
      $region11: #{tpu_custom_call.1} parent=5 // pred_region
        %s277 = ssub.s32 %s17, 1
        // Predicated region
        $region13: #{tpu_custom_call.1} parent=11 // pred_check
          %p278 = pneg %p38
        $region14: #{tpu_custom_call.1} parent=11 // pred_check_branch
          %280 = sbr.rel (%p278) target = $region16
        $region15: #{tpu_custom_call.1} parent=11 // pred_region
          %s282 = ssub.s32 16, 16
          %283 = vsyncadd [#allocation3], %s282
          %s285 = sshll.u32 %s0, 4
          %s286 = int_to_ptr.vmem [resolvable:$true] %s285
          %288 = dma.vmem_to_smem %s286, 16, [#allocation2], [#allocation3]
        $region16: #{tpu_custom_call.1} parent=11 // pred_fallthru
          _
        // Predicated region
        $region17: #{tpu_custom_call.1} parent=11 // pred_check
          %p289 = pneg %p111
        $region18: #{tpu_custom_call.1} parent=11 // pred_check_branch
          %291 = sbr.rel (%p289) target = $region20
        $region19: #{tpu_custom_call.1} parent=11 // pred_region
          _
        $region20: #{tpu_custom_call.1} parent=11 // pred_fallthru
          _
        // Predicated region
        $region21: #{tpu_custom_call.1} parent=11 // pred_check
          %p292 = pneg %p132
        $region22: #{tpu_custom_call.1} parent=11 // pred_check_branch
          %294 = sbr.rel (%p292) target = $region24
        $region23: #{tpu_custom_call.1} parent=11 // pred_region
          _
        $region24: #{tpu_custom_call.1} parent=11 // pred_fallthru
          _
        // Predicated region
        $region25: #{tpu_custom_call.1} parent=11 // pred_check
          %p295 = pneg %p153
        $region26: #{tpu_custom_call.1} parent=11 // pred_check_branch
          %297 = sbr.rel (%p295) target = $region28
        $region27: #{tpu_custom_call.1} parent=11 // pred_region
          _
        $region28: #{tpu_custom_call.1} parent=11 // pred_fallthru
          _
        // Predicated region
        $region29: #{tpu_custom_call.1} parent=11 // pred_check
          %p298 = pneg %p174
        $region30: #{tpu_custom_call.1} parent=11 // pred_check_branch
          %300 = sbr.rel (%p298) target = $region32
        $region31: #{tpu_custom_call.1} parent=11 // pred_region
          _
        $region32: #{tpu_custom_call.1} parent=11 // pred_fallthru
          _
        // Predicated region
        $region33: #{tpu_custom_call.1} parent=11 // pred_check
          %p301 = pneg %p195
        $region34: #{tpu_custom_call.1} parent=11 // pred_check_branch
          %303 = sbr.rel (%p301) target = $region36
        $region35: #{tpu_custom_call.1} parent=11 // pred_region
          _
        $region36: #{tpu_custom_call.1} parent=11 // pred_fallthru
          _
        // Predicated region
        $region37: #{tpu_custom_call.1} parent=11 // pred_check
          %p304 = pneg %p216
        $region38: #{tpu_custom_call.1} parent=11 // pred_check_branch
          %306 = sbr.rel (%p304) target = $region40
        $region39: #{tpu_custom_call.1} parent=11 // pred_region
          _
        $region40: #{tpu_custom_call.1} parent=11 // pred_fallthru
          _
        // Predicated region
        $region41: #{tpu_custom_call.1} parent=11 // pred_check
          %p307 = pneg %p237
        $region42: #{tpu_custom_call.1} parent=11 // pred_check_branch
          %309 = sbr.rel (%p307) target = $region44
        $region43: #{tpu_custom_call.1} parent=11 // pred_region
          _
        $region44: #{tpu_custom_call.1} parent=11 // pred_fallthru
          _
      $region12: #{tpu_custom_call.1} parent=5 // pred_fallthru
        _
      %p310 = scmp.lt.s32.totalorder %s17, 2
      // Predicated region
      $region45: #{tpu_custom_call.1} parent=5 // pred_check
        %p311 = pneg %p310
      $region46: #{tpu_custom_call.1} parent=5 // pred_check_branch
        %313 = sbr.rel (%p311) target = $region48
      $region47: #{tpu_custom_call.1} parent=5 // pred_region
        // Predicated region
        $region49: #{tpu_custom_call.1} parent=47 // pred_check
          %p314 = pneg %p58
        $region50: #{tpu_custom_call.1} parent=47 // pred_check_branch
          %316 = sbr.rel (%p314) target = $region52
        $region51: #{tpu_custom_call.1} parent=47 // pred_region
          %p317 = scmp.lt.s32.totalorder %s17, 1
          %s318 = scalar_select %p317, %s17, 1
          %s319 = smul.addr %s318, 8
          %s320 = scalar_lea.vmem %s1, %s319
        $region52: #{tpu_custom_call.1} parent=47 // pred_fallthru
          _
        // Predicated region
        $region53: #{tpu_custom_call.1} parent=47 // pred_check
          %p321 = pneg %p84
        $region54: #{tpu_custom_call.1} parent=47 // pred_check_branch
          %323 = sbr.rel (%p321) target = $region56
        $region55: #{tpu_custom_call.1} parent=47 // pred_region
          %p324 = scmp.lt.s32.totalorder %s17, 1
          %s325 = scalar_select %p324, %s17, 1
          %s326 = smul.addr %s325, 8
          %s327 = scalar_lea.vmem %s2, %s326
        $region56: #{tpu_custom_call.1} parent=47 // pred_fallthru
          _
      $region48: #{tpu_custom_call.1} parent=5 // pred_fallthru
        _
      %p328 = scmp.le.s32.totalorder 1, %s17
      %p329 = scmp.lt.s32.totalorder %s17, 3
      %p330 = pnand %p328, %p329
      %p331 = pneg %p330
      // Predicated region
      $region57: #{tpu_custom_call.1} parent=5 // pred_check
        _
      $region58: #{tpu_custom_call.1} parent=5 // pred_check_branch
        %333 = sbr.rel (%p330) target = $region60
      $region59: #{tpu_custom_call.1} parent=5 // pred_region
        %s334 = ssub.s32 %s17, 1
        // Predicated region
        $region61: #{tpu_custom_call.1} parent=59 // pred_check
          %p335 = pneg %p38
        $region62: #{tpu_custom_call.1} parent=59 // pred_check_branch
          %337 = sbr.rel (%p335) target = $region64
        $region63: #{tpu_custom_call.1} parent=59 // pred_region
          %338 = dma.done [#allocation3], 16
        $region64: #{tpu_custom_call.1} parent=59 // pred_fallthru
          _
        %339 = sfence
        %p340 = pneg %p38
        %p341 = pneg %p35
        %p342 = scmp.lt.s32.totalorder %s22, 1
        %s343 = scalar_select %p342, %s22, 1
        %s344 = smul.addr %s343, 8
        %s345 = scalar_lea.vmem %s1, %s344
        %p346 = pneg %p64
        %p347 = pneg %p61
        %p348 = scmp.lt.s32.totalorder %s22, 1
        %s349 = scalar_select %p348, %s22, 1
        %s350 = smul.addr %s349, 8
        %s351 = scalar_lea.vmem %s2, %s350
        %p352 = pneg %p90
        %p353 = pneg %p87
        %p354 = pneg %p111
        %p355 = pneg %p108
        %p356 = pneg %p132
        %p357 = pneg %p129
        %p358 = pneg %p153
        %p359 = pneg %p150
        %p360 = pneg %p174
        %p361 = pneg %p171
        %p362 = pneg %p195
        %p363 = pneg %p192
        %p364 = pneg %p216
        %p365 = pneg %p213
        %p366 = pneg %p237
        %p367 = pneg %p234
        %p368 = pneg %p263
        %p369 = pneg %p260
        %p370 = scmp.lt.s32.totalorder %s22, 1
        %s371 = scalar_select %p370, %s22, 1
        %s372 = smul.addr %s371, 3
        %s373 = smul.addr %s372, 8
        %s374 = scalar_lea.vmem %s10, %s373
        %p375 = scmp.lt.s32.totalorder %s22, 1
        %s376 = scalar_select %p375, %s22, 1
        %s377 = smul.addr %s376, 8
        %s378 = scalar_lea.vmem %s1, %s377
        %p379 = scmp.lt.s32.totalorder %s22, 1
        %s380 = scalar_select %p379, %s22, 1
        %s381 = smul.addr %s380, 8
        %s382 = scalar_lea.vmem %s2, %s381
        %p383 = scmp.lt.s32.totalorder %s22, 1
        %s384 = scalar_select %p383, %s22, 1
        %s385 = smul.addr %s384, 3
        %s386 = smul.addr %s385, 8
        %s387 = scalar_lea.vmem %s10, %s386
        %v388 = vld [vmem:[%s378] sm:$0xff]
        %v389 = vld [vmem:[%s382] sm:$0xff]
        %v390 = vld [vmem:[%s3] sm:$0xff]
        %vm391 = vcmask 64512
        %v393 = vsel %vm391, %v390, 0
        %395 = vmatprep.subr.mxu0 0.0
        %396 = vmatpush1.msra.mxu0 0.0
        %397 = vmatprep.subr.mxu0 0.0
        %398 = vmatpush1.msra.mxu0 0.0
        %399 = vmatprep.subr.mxu0 0.0
        %400 = vmatpush1.msra.mxu0 0.0
        %401 = vmatprep.subr.mxu0 0.0
        %402 = vmatpush1.msra.mxu0 0.0
        %403 = vmatprep.subr.mxu0 0.0
        %404 = vmatpush1.msra.mxu0 0.0
        %405 = vmatprep.subr.mxu0 0.0
        %406 = vmatpush1.msra.mxu0 0.0
        %407 = vmatprep.subr.mxu0 0.0
        %408 = vmatpush1.msra.mxu0 0.0
        %409 = vmatprep.subr.mxu0 0.0
        %410 = vmatpush1.msra.mxu0 0.0
        %411 = vmatprep.subr.mxu0 0.0
        %412 = vmatpush1.msra.mxu0 0.0
        %413 = vmatprep.subr.mxu0 0.0
        %414 = vmatpush1.msra.mxu0 0.0
        %415 = vmatprep.subr.mxu0 0.0
        %416 = vmatpush1.msra.mxu0 0.0
        %417 = vmatprep.subr.mxu0 0.0
        %418 = vmatpush1.msra.mxu0 0.0
        %419 = vmatprep.subr.mxu0 0.0
        %420 = vmatpush1.msra.mxu0 0.0
        %421 = vmatprep.subr.mxu0 0.0
        %422 = vmatpush1.msra.mxu0 0.0
        %423 = vmatprep.subr.mxu0 0.0
        %424 = vmatpush1.msra.mxu0 0.0
        %425 = vmatprep.subr.mxu0 0.0
        %426 = vmatpush1.msra.mxu0 %v388
        %427 = vmatprep.subr.mxu0 0.0
        %428 = vmatpush2.msra.mxu0 0.0
        %429 = vmatprep.subr.mxu0 0.0
        %430 = vmatpush2.msra.mxu0 0.0
        %431 = vmatprep.subr.mxu0 0.0
        %432 = vmatpush2.msra.mxu0 0.0
        %433 = vmatprep.subr.mxu0 0.0
        %434 = vmatpush2.msra.mxu0 0.0
        %435 = vmatprep.subr.mxu0 0.0
        %436 = vmatpush2.msra.mxu0 0.0
        %437 = vmatprep.subr.mxu0 0.0
        %438 = vmatpush2.msra.mxu0 0.0
        %439 = vmatprep.subr.mxu0 0.0
        %440 = vmatpush2.msra.mxu0 0.0
        %441 = vmatprep.subr.mxu0 0.0
        %442 = vmatpush2.msra.mxu0 0.0
        %443 = vmatprep.subr.mxu0 0.0
        %444 = vmatpush2.msra.mxu0 0.0
        %445 = vmatprep.subr.mxu0 0.0
        %446 = vmatpush2.msra.mxu0 0.0
        %447 = vmatprep.subr.mxu0 0.0
        %448 = vmatpush2.msra.mxu0 0.0
        %449 = vmatprep.subr.mxu0 0.0
        %450 = vmatpush2.msra.mxu0 0.0
        %451 = vmatprep.subr.mxu0 0.0
        %452 = vmatpush2.msra.mxu0 0.0
        %453 = vmatprep.subr.mxu0 0.0
        %454 = vmatpush2.msra.mxu0 0.0
        %455 = vmatprep.subr.mxu0 0.0
        %456 = vmatpush2.msra.mxu0 0.0
        %457 = vmatprep.subr.mxu0 0.0
        %458 = vmatpush2.msra.mxu0 0.0
        %459 = vmatprep.mubr.f32.mxu0 0.0
        %460 = vmatmul.mubr.f32.gmra.mxu0 %v393
        %v461 = vpop.f32.mrf.mxu0
        %v462 = vadd.f32 0.0, %v461
        %v463 = vpop.f32.mrf.mxu0
        %464 = vdwg.mxu0
        %v465 = vld [vmem:[%s4] sm:$0xff]
        %v466 = vld [vmem:[%s4 + $0x8] sm:$0xff]
        %v467 = vld [vmem:[%s4 + $0x10] sm:$0xff]
        %v468 = vld [vmem:[%s4 + $0x18] sm:$0xff]
        %v470 = vsel %vm391, %v465, 0
        %v473 = vsel %vm391, %v466, 0
        %v476 = vsel %vm391, %v467, 0
        %v479 = vsel %vm391, %v468, 0
        %481 = vmatprep.subr.mxu0 0.0
        %482 = vmatpush1.msra.mxu0 0.0
        %483 = vmatprep.subr.mxu0 0.0
        %484 = vmatpush1.msra.mxu0 0.0
        %485 = vmatprep.subr.mxu0 0.0
        %486 = vmatpush1.msra.mxu0 0.0
        %487 = vmatprep.subr.mxu0 0.0
        %488 = vmatpush1.msra.mxu0 0.0
        %489 = vmatprep.subr.mxu0 0.0
        %490 = vmatpush1.msra.mxu0 0.0
        %491 = vmatprep.subr.mxu0 0.0
        %492 = vmatpush1.msra.mxu0 0.0
        %493 = vmatprep.subr.mxu0 0.0
        %494 = vmatpush1.msra.mxu0 0.0
        %495 = vmatprep.subr.mxu0 0.0
        %496 = vmatpush1.msra.mxu0 0.0
        %497 = vmatprep.subr.mxu0 0.0
        %498 = vmatpush1.msra.mxu0 0.0
        %499 = vmatprep.subr.mxu0 0.0
        %500 = vmatpush1.msra.mxu0 0.0
        %501 = vmatprep.subr.mxu0 0.0
        %502 = vmatpush1.msra.mxu0 0.0
        %503 = vmatprep.subr.mxu0 0.0
        %504 = vmatpush1.msra.mxu0 0.0
        %505 = vmatprep.subr.mxu0 0.0
        %506 = vmatpush1.msra.mxu0 0.0
        %507 = vmatprep.subr.mxu0 0.0
        %508 = vmatpush1.msra.mxu0 0.0
        %509 = vmatprep.subr.mxu0 0.0
        %510 = vmatpush1.msra.mxu0 0.0
        %511 = vmatprep.subr.mxu0 0.0
        %512 = vmatpush1.msra.mxu0 %v389
        %513 = vmatprep.subr.mxu0 0.0
        %514 = vmatpush2.msra.mxu0 0.0
        %515 = vmatprep.subr.mxu0 0.0
        %516 = vmatpush2.msra.mxu0 0.0
        %517 = vmatprep.subr.mxu0 0.0
        %518 = vmatpush2.msra.mxu0 0.0
        %519 = vmatprep.subr.mxu0 0.0
        %520 = vmatpush2.msra.mxu0 0.0
        %521 = vmatprep.subr.mxu0 0.0
        %522 = vmatpush2.msra.mxu0 0.0
        %523 = vmatprep.subr.mxu0 0.0
        %524 = vmatpush2.msra.mxu0 0.0
        %525 = vmatprep.subr.mxu0 0.0
        %526 = vmatpush2.msra.mxu0 0.0
        %527 = vmatprep.subr.mxu0 0.0
        %528 = vmatpush2.msra.mxu0 0.0
        %529 = vmatprep.subr.mxu0 0.0
        %530 = vmatpush2.msra.mxu0 0.0
        %531 = vmatprep.subr.mxu0 0.0
        %532 = vmatpush2.msra.mxu0 0.0
        %533 = vmatprep.subr.mxu0 0.0
        %534 = vmatpush2.msra.mxu0 0.0
        %535 = vmatprep.subr.mxu0 0.0
        %536 = vmatpush2.msra.mxu0 0.0
        %537 = vmatprep.subr.mxu0 0.0
        %538 = vmatpush2.msra.mxu0 0.0
        %539 = vmatprep.subr.mxu0 0.0
        %540 = vmatpush2.msra.mxu0 0.0
        %541 = vmatprep.subr.mxu0 0.0
        %542 = vmatpush2.msra.mxu0 0.0
        %543 = vmatprep.subr.mxu0 0.0
        %544 = vmatpush2.msra.mxu0 0.0
        %545 = vmatprep.mubr.f32.mxu0 0.0
        %546 = vmatmul.mubr.f32.gmra.mxu0 %v470
        %v547 = vpop.f32.mrf.mxu0
        %v548 = vadd.f32 0.0, %v547
        %v549 = vpop.f32.mrf.mxu0
        %550 = vmatprep.mubr.f32.mxu0 0.0
        %551 = vmatmul.mubr.f32.gmra.mxu0 %v473
        %v552 = vpop.f32.mrf.mxu0
        %v553 = vadd.f32 0.0, %v552
        %v554 = vpop.f32.mrf.mxu0
        %555 = vmatprep.mubr.f32.mxu0 0.0
        %556 = vmatmul.mubr.f32.gmra.mxu0 %v476
        %v557 = vpop.f32.mrf.mxu0
        %v558 = vadd.f32 0.0, %v557
        %v559 = vpop.f32.mrf.mxu0
        %560 = vmatprep.mubr.f32.mxu0 0.0
        %561 = vmatmul.mubr.f32.gmra.mxu0 %v479
        %v562 = vpop.f32.mrf.mxu0
        %v563 = vadd.f32 0.0, %v562
        %v564 = vpop.f32.mrf.mxu0
        %565 = vdwg.mxu0
        %v566 = vlaneseq
        %v567 = vand.u32 %v566, 127
        %vm568 = vcmp.gt.s32.totalorder %v567, 0
        %vm569 = vcmp.lt.s32.totalorder %v567, 15
        %vm570 = vcmask 1047680
        %571 = vrot.lane.b32.xlu0 %v462, 16
        %v572 = vpop.permute.xlu0 %571
        %v573 = vsel %vm570, %v572, %v462
        %574 = vrot.lane.b32.xlu0 %v573, 16
        %v575 = vpop.permute.xlu0 %574
        %v576 = vsel %vm570, %v575, %v462
        %v577 = vsel %vm568, 1, 0
        %vm578 = vcmp.eq.s32.totalorder %v577, 1
        %580 = vrot.lane.b32.xlu0 %v576, 113
        %v581 = vpop.permute.xlu0 %580
        %v583 = vsel %vm578, %v581, 0.0
        %v584 = vsel %vm569, 1, 0
        %vm585 = vcmp.eq.s32.totalorder %v584, 1
        %586 = vrot.lane.b32.xlu0 %v576, 127
        %v587 = vpop.permute.xlu0 %586
        %v589 = vsel %vm585, %v587, 0.0
        %v590 = vsel %vm578, %v581, -3.4028235e+38
        %v591 = vmax.f32 %v590, %v462
        %v592 = vsel %vm585, %v587, -3.4028235e+38
        %v593 = vmax.f32 %v591, %v592
        %594 = vrot.lane.b32.xlu0 %v548, 16
        %v595 = vpop.permute.xlu0 %594
        %v596 = vsel %vm570, %v595, %v548
        %597 = vrot.lane.b32.xlu0 %v596, 16
        %v598 = vpop.permute.xlu0 %597
        %v599 = vsel %vm570, %v598, %v548
        %601 = vrot.lane.b32.xlu0 %v599, 113
        %v602 = vpop.permute.xlu0 %601
        %v604 = vsel %vm578, %v602, 0.0
        %605 = vrot.lane.b32.xlu0 %v599, 127
        %v606 = vpop.permute.xlu0 %605
        %v608 = vsel %vm585, %v606, 0.0
        %v609 = vsel %vm578, %v602, -3.4028235e+38
        %v610 = vmax.f32 %v609, %v548
        %v611 = vsel %vm585, %v606, -3.4028235e+38
        %v612 = vmax.f32 %v610, %v611
        %v613 = vld [vmem:[%s7] sm:$0xff]
        %s614 = sld [smem:[#allocation2]]
        %v615 = vstv %s614
        %v616 = vmul.f32 %v615, %v593
        %vm617 = vcmask 392192
        %v619 = vsel %vm617, %v613, 0
        %621 = vmatprep.subr.mxu0 0.0
        %622 = vmatpush1.msra.mxu0 0.0
        %623 = vmatprep.subr.mxu0 0.0
        %624 = vmatpush1.msra.mxu0 0.0
        %625 = vmatprep.subr.mxu0 0.0
        %626 = vmatpush1.msra.mxu0 0.0
        %627 = vmatprep.subr.mxu0 0.0
        %628 = vmatpush1.msra.mxu0 0.0
        %629 = vmatprep.subr.mxu0 0.0
        %630 = vmatpush1.msra.mxu0 0.0
        %631 = vmatprep.subr.mxu0 0.0
        %632 = vmatpush1.msra.mxu0 0.0
        %633 = vmatprep.subr.mxu0 0.0
        %634 = vmatpush1.msra.mxu0 0.0
        %635 = vmatprep.subr.mxu0 0.0
        %636 = vmatpush1.msra.mxu0 0.0
        %637 = vmatprep.subr.mxu0 0.0
        %638 = vmatpush1.msra.mxu0 0.0
        %639 = vmatprep.subr.mxu0 0.0
        %640 = vmatpush1.msra.mxu0 0.0
        %641 = vmatprep.subr.mxu0 0.0
        %642 = vmatpush1.msra.mxu0 %v608
        %643 = vmatprep.subr.mxu0 0.0
        %644 = vmatpush1.msra.mxu0 %v548
        %645 = vmatprep.subr.mxu0 0.0
        %646 = vmatpush1.msra.mxu0 %v604
        %647 = vmatprep.subr.mxu0 0.0
        %648 = vmatpush1.msra.mxu0 %v589
        %649 = vmatprep.subr.mxu0 0.0
        %650 = vmatpush1.msra.mxu0 %v462
        %651 = vmatprep.subr.mxu0 0.0
        %652 = vmatpush1.msra.mxu0 %v583
        %653 = vmatprep.subr.mxu0 0.0
        %654 = vmatpush2.msra.mxu0 0.0
        %655 = vmatprep.subr.mxu0 0.0
        %656 = vmatpush2.msra.mxu0 0.0
        %657 = vmatprep.subr.mxu0 0.0
        %658 = vmatpush2.msra.mxu0 0.0
        %659 = vmatprep.subr.mxu0 0.0
        %660 = vmatpush2.msra.mxu0 0.0
        %661 = vmatprep.subr.mxu0 0.0
        %662 = vmatpush2.msra.mxu0 0.0
        %663 = vmatprep.subr.mxu0 0.0
        %664 = vmatpush2.msra.mxu0 0.0
        %665 = vmatprep.subr.mxu0 0.0
        %666 = vmatpush2.msra.mxu0 0.0
        %667 = vmatprep.subr.mxu0 0.0
        %668 = vmatpush2.msra.mxu0 0.0
        %669 = vmatprep.subr.mxu0 0.0
        %670 = vmatpush2.msra.mxu0 0.0
        %671 = vmatprep.subr.mxu0 0.0
        %672 = vmatpush2.msra.mxu0 0.0
        %673 = vmatprep.subr.mxu0 0.0
        %674 = vmatpush2.msra.mxu0 0.0
        %675 = vmatprep.subr.mxu0 0.0
        %676 = vmatpush2.msra.mxu0 0.0
        %677 = vmatprep.subr.mxu0 0.0
        %678 = vmatpush2.msra.mxu0 0.0
        %679 = vmatprep.subr.mxu0 0.0
        %680 = vmatpush2.msra.mxu0 0.0
        %681 = vmatprep.subr.mxu0 0.0
        %682 = vmatpush2.msra.mxu0 0.0
        %683 = vmatprep.subr.mxu0 0.0
        %684 = vmatpush2.msra.mxu0 0.0
        %685 = vmatprep.mubr.f32.mxu0 0.0
        %686 = vmatmul.mubr.f32.gmra.mxu0 %v619
        %v687 = vpop.f32.mrf.mxu0
        %v688 = vadd.f32 %v616, %v687
        %v689 = vpop.f32.mrf.mxu0
        %690 = vdwg.mxu0
        %s691 = sld [smem:[#allocation2 + $0x1]]
        %v692 = vstv %s691
        %v693 = vmul.f32 %v692, %v612
        %v694 = vadd.f32 %v688, %v693
        %695 = vrot.lane.b32.xlu0 %v694, 16
        %v696 = vpop.permute.xlu0 %695
        %v697 = vsel %vm570, %v696, %v694
        %698 = vrot.lane.b32.xlu0 %v697, 16
        %v699 = vpop.permute.xlu0 %698
        %v700 = vsel %vm570, %v699, %v694
        %702 = vrot.lane.b32.xlu0 %v700, 113
        %v703 = vpop.permute.xlu0 %702
        %v705 = vsel %vm578, %v703, 0.0
        %706 = vrot.lane.b32.xlu0 %v700, 127
        %v707 = vpop.permute.xlu0 %706
        %v709 = vsel %vm585, %v707, 0.0
        %v710 = vsel %vm578, %v703, -3.4028235e+38
        %v711 = vmax.f32 %v710, %v694
        %v712 = vsel %vm585, %v707, -3.4028235e+38
        %v713 = vmax.f32 %v711, %v712
        %v714 = vld [vmem:[%s8] sm:$0xff]
        %s715 = sld [smem:[#allocation2 + $0x2]]
        %v716 = vstv %s715
        %v717 = vmul.f32 %v716, %v593
        %vm718 = vcmask 588800
        %v720 = vsel %vm718, %v714, 0
        %722 = vmatprep.subr.mxu0 0.0
        %723 = vmatpush1.msra.mxu0 0.0
        %724 = vmatprep.subr.mxu0 0.0
        %725 = vmatpush1.msra.mxu0 0.0
        %726 = vmatprep.subr.mxu0 0.0
        %727 = vmatpush1.msra.mxu0 0.0
        %728 = vmatprep.subr.mxu0 0.0
        %729 = vmatpush1.msra.mxu0 0.0
        %730 = vmatprep.subr.mxu0 0.0
        %731 = vmatpush1.msra.mxu0 0.0
        %732 = vmatprep.subr.mxu0 0.0
        %733 = vmatpush1.msra.mxu0 0.0
        %734 = vmatprep.subr.mxu0 0.0
        %735 = vmatpush1.msra.mxu0 0.0
        %736 = vmatprep.subr.mxu0 0.0
        %737 = vmatpush1.msra.mxu0 %v709
        %738 = vmatprep.subr.mxu0 0.0
        %739 = vmatpush1.msra.mxu0 %v694
        %740 = vmatprep.subr.mxu0 0.0
        %741 = vmatpush1.msra.mxu0 %v705
        %742 = vmatprep.subr.mxu0 0.0
        %743 = vmatpush1.msra.mxu0 %v608
        %744 = vmatprep.subr.mxu0 0.0
        %745 = vmatpush1.msra.mxu0 %v548
        %746 = vmatprep.subr.mxu0 0.0
        %747 = vmatpush1.msra.mxu0 %v604
        %748 = vmatprep.subr.mxu0 0.0
        %749 = vmatpush1.msra.mxu0 %v589
        %750 = vmatprep.subr.mxu0 0.0
        %751 = vmatpush1.msra.mxu0 %v462
        %752 = vmatprep.subr.mxu0 0.0
        %753 = vmatpush1.msra.mxu0 %v583
        %754 = vmatprep.subr.mxu0 0.0
        %755 = vmatpush2.msra.mxu0 0.0
        %756 = vmatprep.subr.mxu0 0.0
        %757 = vmatpush2.msra.mxu0 0.0
        %758 = vmatprep.subr.mxu0 0.0
        %759 = vmatpush2.msra.mxu0 0.0
        %760 = vmatprep.subr.mxu0 0.0
        %761 = vmatpush2.msra.mxu0 0.0
        %762 = vmatprep.subr.mxu0 0.0
        %763 = vmatpush2.msra.mxu0 0.0
        %764 = vmatprep.subr.mxu0 0.0
        %765 = vmatpush2.msra.mxu0 0.0
        %766 = vmatprep.subr.mxu0 0.0
        %767 = vmatpush2.msra.mxu0 0.0
        %768 = vmatprep.subr.mxu0 0.0
        %769 = vmatpush2.msra.mxu0 0.0
        %770 = vmatprep.subr.mxu0 0.0
        %771 = vmatpush2.msra.mxu0 0.0
        %772 = vmatprep.subr.mxu0 0.0
        %773 = vmatpush2.msra.mxu0 0.0
        %774 = vmatprep.subr.mxu0 0.0
        %775 = vmatpush2.msra.mxu0 0.0
        %776 = vmatprep.subr.mxu0 0.0
        %777 = vmatpush2.msra.mxu0 0.0
        %778 = vmatprep.subr.mxu0 0.0
        %779 = vmatpush2.msra.mxu0 0.0
        %780 = vmatprep.subr.mxu0 0.0
        %781 = vmatpush2.msra.mxu0 0.0
        %782 = vmatprep.subr.mxu0 0.0
        %783 = vmatpush2.msra.mxu0 0.0
        %784 = vmatprep.subr.mxu0 0.0
        %785 = vmatpush2.msra.mxu0 0.0
        %786 = vmatprep.mubr.f32.mxu0 0.0
        %787 = vmatmul.mubr.f32.gmra.mxu0 %v720
        %v788 = vpop.f32.mrf.mxu0
        %v789 = vadd.f32 %v717, %v788
        %v790 = vpop.f32.mrf.mxu0
        %791 = vdwg.mxu0
        %s792 = sld [smem:[#allocation2 + $0x3]]
        %v793 = vstv %s792
        %v794 = vmul.f32 %v793, %v612
        %v795 = vadd.f32 %v789, %v794
        %s796 = sld [smem:[#allocation2 + $0x4]]
        %v797 = vstv %s796
        %v798 = vmul.f32 %v797, %v713
        %v799 = vadd.f32 %v795, %v798
        %800 = vrot.lane.b32.xlu0 %v799, 16
        %v801 = vpop.permute.xlu0 %800
        %v802 = vsel %vm570, %v801, %v799
        %803 = vrot.lane.b32.xlu0 %v802, 16
        %v804 = vpop.permute.xlu0 %803
        %v805 = vsel %vm570, %v804, %v799
        %807 = vrot.lane.b32.xlu0 %v805, 113
        %v808 = vpop.permute.xlu0 %807
        %v810 = vsel %vm578, %v808, 0.0
        %811 = vrot.lane.b32.xlu0 %v805, 127
        %v812 = vpop.permute.xlu0 %811
        %v814 = vsel %vm585, %v812, 0.0
        %v815 = vsel %vm578, %v808, -3.4028235e+38
        %v816 = vmax.f32 %v815, %v799
        %v817 = vsel %vm585, %v812, -3.4028235e+38
        %v818 = vmax.f32 %v816, %v817
        %v819 = vld [vmem:[%s9] sm:$0xff]
        %s820 = sld [smem:[#allocation2 + $0x5]]
        %v821 = vstv %s820
        %v822 = vmul.f32 %v821, %v593
        %vm823 = vcmask 785408
        %v825 = vsel %vm823, %v819, 0
        %827 = vmatprep.subr.mxu0 0.0
        %828 = vmatpush1.msra.mxu0 0.0
        %829 = vmatprep.subr.mxu0 0.0
        %830 = vmatpush1.msra.mxu0 0.0
        %831 = vmatprep.subr.mxu0 0.0
        %832 = vmatpush1.msra.mxu0 0.0
        %833 = vmatprep.subr.mxu0 0.0
        %834 = vmatpush1.msra.mxu0 0.0
        %835 = vmatprep.subr.mxu0 0.0
        %836 = vmatpush1.msra.mxu0 %v814
        %837 = vmatprep.subr.mxu0 0.0
        %838 = vmatpush1.msra.mxu0 %v799
        %839 = vmatprep.subr.mxu0 0.0
        %840 = vmatpush1.msra.mxu0 %v810
        %841 = vmatprep.subr.mxu0 0.0
        %842 = vmatpush1.msra.mxu0 %v709
        %843 = vmatprep.subr.mxu0 0.0
        %844 = vmatpush1.msra.mxu0 %v694
        %845 = vmatprep.subr.mxu0 0.0
        %846 = vmatpush1.msra.mxu0 %v705
        %847 = vmatprep.subr.mxu0 0.0
        %848 = vmatpush1.msra.mxu0 %v608
        %849 = vmatprep.subr.mxu0 0.0
        %850 = vmatpush1.msra.mxu0 %v548
        %851 = vmatprep.subr.mxu0 0.0
        %852 = vmatpush1.msra.mxu0 %v604
        %853 = vmatprep.subr.mxu0 0.0
        %854 = vmatpush1.msra.mxu0 %v589
        %855 = vmatprep.subr.mxu0 0.0
        %856 = vmatpush1.msra.mxu0 %v462
        %857 = vmatprep.subr.mxu0 0.0
        %858 = vmatpush1.msra.mxu0 %v583
        %859 = vmatprep.subr.mxu0 0.0
        %860 = vmatpush2.msra.mxu0 0.0
        %861 = vmatprep.subr.mxu0 0.0
        %862 = vmatpush2.msra.mxu0 0.0
        %863 = vmatprep.subr.mxu0 0.0
        %864 = vmatpush2.msra.mxu0 0.0
        %865 = vmatprep.subr.mxu0 0.0
        %866 = vmatpush2.msra.mxu0 0.0
        %867 = vmatprep.subr.mxu0 0.0
        %868 = vmatpush2.msra.mxu0 0.0
        %869 = vmatprep.subr.mxu0 0.0
        %870 = vmatpush2.msra.mxu0 0.0
        %871 = vmatprep.subr.mxu0 0.0
        %872 = vmatpush2.msra.mxu0 0.0
        %873 = vmatprep.subr.mxu0 0.0
        %874 = vmatpush2.msra.mxu0 0.0
        %875 = vmatprep.subr.mxu0 0.0
        %876 = vmatpush2.msra.mxu0 0.0
        %877 = vmatprep.subr.mxu0 0.0
        %878 = vmatpush2.msra.mxu0 0.0
        %879 = vmatprep.subr.mxu0 0.0
        %880 = vmatpush2.msra.mxu0 0.0
        %881 = vmatprep.subr.mxu0 0.0
        %882 = vmatpush2.msra.mxu0 0.0
        %883 = vmatprep.subr.mxu0 0.0
        %884 = vmatpush2.msra.mxu0 0.0
        %885 = vmatprep.subr.mxu0 0.0
        %886 = vmatpush2.msra.mxu0 0.0
        %887 = vmatprep.subr.mxu0 0.0
        %888 = vmatpush2.msra.mxu0 0.0
        %889 = vmatprep.subr.mxu0 0.0
        %890 = vmatpush2.msra.mxu0 0.0
        %891 = vmatprep.mubr.f32.mxu0 0.0
        %892 = vmatmul.mubr.f32.gmra.mxu0 %v825
        %v893 = vpop.f32.mrf.mxu0
        %v894 = vadd.f32 %v822, %v893
        %v895 = vpop.f32.mrf.mxu0
        %896 = vdwg.mxu0
        %s897 = sld [smem:[#allocation2 + $0x6]]
        %v898 = vstv %s897
        %v899 = vmul.f32 %v898, %v612
        %v900 = vadd.f32 %v894, %v899
        %s901 = sld [smem:[#allocation2 + $0x7]]
        %v902 = vstv %s901
        %v903 = vmul.f32 %v902, %v713
        %v904 = vadd.f32 %v900, %v903
        %s905 = sld [smem:[#allocation2 + $0x8]]
        %v906 = vstv %s905
        %v907 = vmul.f32 %v906, %v818
        %v908 = vadd.f32 %v904, %v907
        %v909 = vadd.f32 %v694, %v553
        %v910 = vadd.f32 %v799, %v558
        %v911 = vadd.f32 %v908, %v563
        %vm912 = vcmask 130048
        %v913 = vsel %vm912, %v909, 0.0
        %v914 = vsel %vm912, %v910, 0.0
        %v915 = vadd.f32 %v913, %v914
        %v916 = vsel %vm912, %v911, 0.0
        %v917 = vadd.f32 %v915, %v916
        %v918 = vrot.slane %v917, 4
        %v919 = vadd.f32 %v917, %v918
        %v920 = vrot.slane %v919, 2
        %v921 = vadd.f32 %v919, %v920
        %v922 = vrot.slane %v921, 1
        %v923 = vadd.f32 %v921, %v922
        %v924 = vrcp.pop 24.0
        %v925 = vmul.f32 %v923, %v924
        %v926 = vsub.f32 %v909, %v925
        %v927 = vsub.f32 %v910, %v925
        %v928 = vsub.f32 %v911, %v925
        %v929 = vmul.f32 %v926, %v926
        %v930 = vmul.f32 %v927, %v927
        %v931 = vmul.f32 %v928, %v928
        %v932 = vsel %vm912, %v929, 0.0
        %v933 = vsel %vm912, %v930, 0.0
        %v934 = vadd.f32 %v932, %v933
        %v935 = vsel %vm912, %v931, 0.0
        %v936 = vadd.f32 %v934, %v935
        %v937 = vrot.slane %v936, 4
        %v938 = vadd.f32 %v936, %v937
        %v939 = vrot.slane %v938, 2
        %v940 = vadd.f32 %v938, %v939
        %v941 = vrot.slane %v940, 1
        %v942 = vadd.f32 %v940, %v941
        %v943 = vmul.f32 %v942, %v924
        %v944 = vadd.f32 %v943, 1e-12
        %v945 = vrsqrt.pop %v944
        %v946 = vmul.f32 %v926, %v945
        %v947 = vmul.f32 %v927, %v945
        %v948 = vmul.f32 %v928, %v945
        %v949 = vld [vmem:[%s5] sm:$0xff]
        %v950 = vld [vmem:[%s5 + $0x8] sm:$0xff]
        %v951 = vld [vmem:[%s5 + $0x10] sm:$0xff]
        %953 = vset.pattern.permute.xlu0 0
        %954 = vperm.xlu0 %953, %v949
        %v955 = vpop.permute.xlu0 %954
        %958 = vset.pattern.permute.xlu0 0
        %959 = vperm.xlu0 %958, %v950
        %v960 = vpop.permute.xlu0 %959
        %963 = vset.pattern.permute.xlu0 0
        %964 = vperm.xlu0 %963, %v951
        %v965 = vpop.permute.xlu0 %964
        %v967 = vmul.f32 %v946, %v955
        %v968 = vmul.f32 %v947, %v960
        %v969 = vmul.f32 %v948, %v965
        %v970 = vld [vmem:[%s6] sm:$0xff]
        %v971 = vld [vmem:[%s6 + $0x8] sm:$0xff]
        %v972 = vld [vmem:[%s6 + $0x10] sm:$0xff]
        %974 = vset.pattern.permute.xlu0 0
        %975 = vperm.xlu0 %974, %v970
        %v976 = vpop.permute.xlu0 %975
        %979 = vset.pattern.permute.xlu0 0
        %980 = vperm.xlu0 %979, %v971
        %v981 = vpop.permute.xlu0 %980
        %984 = vset.pattern.permute.xlu0 0
        %985 = vperm.xlu0 %984, %v972
        %v986 = vpop.permute.xlu0 %985
        %v988 = vadd.f32 %v967, %v976
        %v989 = vadd.f32 %v968, %v981
        %v990 = vadd.f32 %v969, %v986
        %991 = vst.msk [vmem:[%s387] sm:$0xff] %vm912, %v988
        %992 = vst.msk [vmem:[%s387 + $0x8] sm:$0xff] %vm912, %v989
        %993 = vst.msk [vmem:[%s387 + $0x10] sm:$0xff] %vm912, %v990
        %p994 = scmp.lt.s32.totalorder %s22, 1
        %s995 = scalar_select %p994, %s22, 1
        %s996 = smul.addr %s995, 3
        %s997 = smul.addr %s996, 8
        %s998 = scalar_lea.vmem %s10, %s997
        // Predicated region
        $region65: #{tpu_custom_call.1} parent=59 // pred_check
          %p999 = pneg %p260
        $region66: #{tpu_custom_call.1} parent=59 // pred_check_branch
          %1001 = sbr.rel (%p999) target = $region68
        $region67: #{tpu_custom_call.1} parent=59 // pred_region
          _
        $region68: #{tpu_custom_call.1} parent=59 // pred_fallthru
          _
      $region60: #{tpu_custom_call.1} parent=5 // pred_fallthru
        _
      %p1002 = scmp.le.s32.totalorder 2, %s17
      // Predicated region
      $region69: #{tpu_custom_call.1} parent=5 // pred_check
        %p1003 = pneg %p1002
      $region70: #{tpu_custom_call.1} parent=5 // pred_check_branch
        %1005 = sbr.rel (%p1003) target = $region72
      $region71: #{tpu_custom_call.1} parent=5 // pred_region
        %s1006 = ssub.s32 %s17, 2
        // Predicated region
        $region73: #{tpu_custom_call.1} parent=71 // pred_check
          %p1007 = pneg %p266
        $region74: #{tpu_custom_call.1} parent=71 // pred_check_branch
          %1009 = sbr.rel (%p1007) target = $region76
        $region75: #{tpu_custom_call.1} parent=71 // pred_region
          %p1010 = scmp.lt.s32.totalorder %s23, 1
          %s1011 = scalar_select %p1010, %s23, 1
          %s1012 = smul.addr %s1011, 3
          %s1013 = smul.addr %s1012, 8
          %s1014 = scalar_lea.vmem %s10, %s1013
        $region76: #{tpu_custom_call.1} parent=71 // pred_fallthru
          _
      $region72: #{tpu_custom_call.1} parent=5 // pred_fallthru
        _
    $region6: #{tpu_custom_call.1} parent=1 // loop_footer
      %s21 = sadd.s32 1, %s17
    $region7: #{tpu_custom_call.1} parent=1 // loop_footer_branch
      %16 = sbr.rel target = $region3
    $region8: #{tpu_custom_call.1} parent=1 // loop_exit
      _
    %1015 = vsyncpa [#allocation3], 1
    %s1016 = scalar_lea.sflag [#allocation3], 1
    %1017 = vsyncpa %s1016, 1

</llo_original>
